<compile_context>
chip_gen: v5e
topology: v5e:2x2
jax: 0.10.0
libtpu: 0.0.40
codegen_flags: <defaults>
</compile_context>

<pallas_src>
import functools

import jax
import jax.numpy as jnp
from jax.experimental import pallas as pl
from jax.experimental.pallas import tpu as pltpu

_NEG_LARGE = -1e30  # finite "-inf" for padded class lanes (exp() underflows to 0)


def _round_up(x, m):
    return pl.cdiv(x, m) * m


def classification_net_kernel(x_ref, we_ref, be_ref, wf_ref, bf_ref, out_ref):
    # embedding_net: Linear(D_in -> dimension). Weights arrive pre-cast to bf16
    # (no per-tile VPU re-cast of resident weights); x is cast in-kernel.
    x = x_ref[...].astype(jnp.bfloat16)
    emb = jnp.dot(x, we_ref[...], preferred_element_type=jnp.float32) + be_ref[...]
    # nonlinear: ReLU (f32 elementwise)
    emb = jnp.maximum(emb, 0.0)
    # fc1: Linear(dimension -> nc_pad). Padded class lanes carry a large
    # negative bias so their exp contribution to the softmax sum is exactly 0.
    logits = jnp.dot(emb.astype(jnp.bfloat16), wf_ref[...],
                     preferred_element_type=jnp.float32) + bf_ref[...]
    # log_softmax over the padded (lane-dense) class dim.
    m = jnp.max(logits, axis=-1, keepdims=True)
    shifted = logits - m
    lse = jnp.log(jnp.sum(jnp.exp(shifted), axis=-1, keepdims=True))
    logp = shifted - lse
    # Store only the real class columns (out block's last dim == n_classes):
    # saves the 8x padded writeback when n_classes << 128, and is a plain
    # lane-dense store when n_classes is already a multiple of 128.
    out_ref[...] = logp[:, :out_ref.shape[1]].astype(out_ref.dtype)


def prepare_params(we, be, wf, bf):
    """One-time parameter prep (call at init, NOT per forward).

    Pads fc1 to a lane-dense (multiple-of-128) class width and pre-casts the
    matmul weights to bf16, so the per-call jitted forward never re-pads or
    re-casts resident weights (and their VMEM residency / one-time DMA is
    halved vs f32).
    """
    dim, n_classes = wf.shape
    nc_pad = max(128, _round_up(n_classes, 128))
    wf_p = jnp.zeros((dim, nc_pad), jnp.bfloat16).at[:, :n_classes].set(
        wf.astype(jnp.bfloat16))
    bf_p = jnp.full((1, nc_pad), _NEG_LARGE, jnp.float32).at[:, :n_classes].set(
        bf.astype(jnp.float32))
    return we.astype(jnp.bfloat16), be.astype(jnp.float32), wf_p, bf_p, n_classes


@functools.partial(jax.jit, static_argnames=("n_classes", "block_b"))
def classification_net(x, we_bf16, be, wf_p, bf_p, *, n_classes, block_b=256):
    B, D_in = x.shape
    dim = we_bf16.shape[1]
    nc_pad = wf_p.shape[1]

    # Batch tiling: multiple-of-8 row tiles (x/out stay f32, so 8-row sublane
    # packing is legal) stream through the grid; weights/biases stay resident.
    tb = min(block_b, _round_up(B, 8))
    # v7x has 2 TensorCores: give the "parallel" batch axis >= 2 grid steps
    # whenever the batch can actually be split (per-step overhead ~0.35 us,
    # so this is cheap on v5e/v6e too).
    if B >= 16 and pl.cdiv(B, tb) < 2:
        tb = max(8, _round_up(pl.cdiv(B, 2), 8))
    b_pad = _round_up(B, tb)
    x_p = x if b_pad == B else jnp.pad(x, ((0, b_pad - B), (0, 0)))

    # Explicit scoped-VMEM budget (v5e default is only 16 MiB scoped; v7x has
    # 64 MiB physical): double-buffered x/out tiles + resident bf16 weights
    # (double-buffered by default) + f32 softmax temporaries, plus headroom,
    # capped below v7x's physical VMEM.
    vmem_bytes = (
        2 * tb * D_in * 4                       # x double-buffer (f32)
        + 2 * tb * n_classes * 4                # out double-buffer (f32)
        + 2 * (D_in * dim + dim * nc_pad) * 2   # resident bf16 weights
        + 2 * (dim + nc_pad) * 4                # resident f32 biases
        + 6 * tb * nc_pad * 4                   # logits/shifted/exp temporaries
    )
    vmem_limit = int(min(max(vmem_bytes + (2 << 20), 16 << 20), 48 << 20))

    # NOTE: pipeline_mode=pl.Buffered(1) on the constant-index weight specs
    # would shave their second buffer; skipped here since the weights are small
    # relative to the budget above and single-buffering them is version-touchy.
    # TODO(synk): for very large D_in, add a trailing "arbitrary" K grid axis
    # over D_in with an f32 accumulator scratch for the first matmul.
    out = pl.pallas_call(
        classification_net_kernel,
        out_shape=jax.ShapeDtypeStruct((b_pad, n_classes), jnp.float32),
        grid=(b_pad // tb,),
        in_specs=[
            pl.BlockSpec((tb, D_in), lambda i: (i, 0)),      # x: streams per tile
            pl.BlockSpec((D_in, dim), lambda i: (0, 0)),     # We (bf16): resident
            pl.BlockSpec((1, dim), lambda i: (0, 0)),        # be: resident
            pl.BlockSpec((dim, nc_pad), lambda i: (0, 0)),   # Wf (bf16, padded): resident
            pl.BlockSpec((1, nc_pad), lambda i: (0, 0)),     # bf (padded): resident
        ],
        out_specs=pl.BlockSpec((tb, n_classes), lambda i: (i, 0)),
        compiler_params=pltpu.CompilerParams(
            dimension_semantics=("parallel",),
            vmem_limit_bytes=vmem_limit),
    )(x_p, we_bf16, be, wf_p, bf_p)

    # Only batch padding remains to drop; class width is already exact.
    return out[:B]


def reference_f32(x, we, be, wf, bf):
    emb = jnp.maximum(x @ we + be, 0.0)
    return jax.nn.log_softmax(emb @ wf + bf, axis=-1)


def reference_bf16(x, we, be, wf, bf):
    # Mirror of the kernel's bf16-input / f32-accumulate matmuls.
    emb = jnp.dot(x.astype(jnp.bfloat16), we.astype(jnp.bfloat16),
                  preferred_element_type=jnp.float32) + be
    emb = jnp.maximum(emb, 0.0)
    logits = jnp.dot(emb.astype(jnp.bfloat16), wf.astype(jnp.bfloat16),
                     preferred_element_type=jnp.float32) + bf
    return jax.nn.log_softmax(logits, axis=-1)


if __name__ == "__main__":
    # Small shapes: batch=8, input features=32, dimension=32, n_classes=16
    B, D_IN, DIM, N_CLASSES = 8, 32, 32, 16

    key = jax.random.PRNGKey(0)
    kx, kwe, kbe, kwf, kbf = jax.random.split(key, 5)

    x = jax.random.normal(kx, (B, D_IN), dtype=jnp.float32)
    # deterministic parameter init (synthetic, not a checkpoint load)
    we = jax.random.normal(kwe, (D_IN, DIM), dtype=jnp.float32) * 0.1
    be = jax.random.normal(kbe, (1, DIM), dtype=jnp.float32) * 0.1
    wf = jax.random.normal(kwf, (DIM, N_CLASSES), dtype=jnp.float32) * 0.1
    bf = jax.random.normal(kbf, (1, N_CLASSES), dtype=jnp.float32) * 0.1

    # One-time parameter prep (padding + bf16 cast) outside the forward pass.
    we_b, be_f, wf_p, bf_p, n_classes = prepare_params(we, be, wf, bf)

    scores = classification_net(x, we_b, be_f, wf_p, bf_p, n_classes=n_classes)
    scores = jax.block_until_ready(scores)
    assert scores.shape == (B, N_CLASSES)

    # Tight check against a reference that mirrors the kernel's bf16 matmuls.
    ref_bf16 = jax.block_until_ready(reference_bf16(x, we, be, wf, bf))
    assert jnp.allclose(scores, ref_bf16, atol=1e-3, rtol=1e-3)

    # Loose check against the full-f32 reference (bf16 matmul-input rounding).
    ref_f32 = jax.block_until_ready(reference_f32(x, we, be, wf, bf))
    assert jnp.allclose(scores, ref_f32, atol=5e-2, rtol=5e-2)

    print("KERNEL_OK")
</pallas_src>

<mosaic_0001>
module attributes {stable_mosaic.version = 11 : i64} {
  func.func @classification_net_kernel(%arg0: i32, %arg1: memref<8x32xf32, #tpu.memory_space<vmem>>, %arg2: memref<32x32xbf16, #tpu.memory_space<vmem>>, %arg3: memref<1x32xf32, #tpu.memory_space<vmem>>, %arg4: memref<32x128xbf16, #tpu.memory_space<vmem>>, %arg5: memref<1x128xf32, #tpu.memory_space<vmem>>, %arg6: memref<8x16xf32, #tpu.memory_space<vmem>>) attributes {dimension_semantics = [#tpu.dimension_semantics<parallel>], iteration_bounds = array<i64: 1>, scalar_prefetch = 0 : i64, scratch_operands = 0 : i64, tpu.core_type = #tpu.core_type<tc>, window_params = [{transform_indices = @transform_0, window_bounds = array<i64: 8, 32>}, {pipeline_mode = #tpu.pipeline_mode<synchronous>, transform_indices = @transform_1, window_bounds = array<i64: 32, 32>}, {pipeline_mode = #tpu.pipeline_mode<synchronous>, transform_indices = @transform_2, window_bounds = array<i64: 1, 32>}, {pipeline_mode = #tpu.pipeline_mode<synchronous>, transform_indices = @transform_3, window_bounds = array<i64: 32, 128>}, {pipeline_mode = #tpu.pipeline_mode<synchronous>, transform_indices = @transform_4, window_bounds = array<i64: 1, 128>}, {transform_indices = @transform_5, window_bounds = array<i64: 8, 16>}]} {
    %c0 = arith.constant 0 : index
    %c0_0 = arith.constant 0 : index
    %0 = vector.load %arg1[%c0, %c0_0] : memref<8x32xf32, #tpu.memory_space<vmem>>, vector<8x32xf32>
    %1 = arith.truncf %0 : vector<8x32xf32> to vector<8x32xbf16>
    %c0_1 = arith.constant 0 : index
    %c0_2 = arith.constant 0 : index
    %2 = vector.load %arg2[%c0_1, %c0_2] : memref<32x32xbf16, #tpu.memory_space<vmem>>, vector<32x32xbf16>
    %cst = arith.constant dense<0.000000e+00> : vector<8x32xf32>
    %3 = tpu.matmul %1, %2, %cst {dimension_numbers = #tpu.dot_dimension_numbers<[1], [0], [0], [1], [0, 0, 1, 1], [], []>} : vector<8x32xbf16>, vector<32x32xbf16>, vector<8x32xf32> -> vector<8x32xf32>
    %c0_3 = arith.constant 0 : index
    %c0_4 = arith.constant 0 : index
    %4 = vector.load %arg3[%c0_3, %c0_4] : memref<1x32xf32, #tpu.memory_space<vmem>>, vector<1x32xf32>
    %5 = vector.broadcast %4 : vector<1x32xf32> to vector<8x32xf32>
    %6 = arith.addf %3, %5 : vector<8x32xf32>
    %cst_5 = arith.constant 0.000000e+00 : f32
    %7 = vector.broadcast %cst_5 : f32 to vector<8x32xf32>
    %8 = arith.maximumf %6, %7 : vector<8x32xf32>
    %9 = arith.truncf %8 : vector<8x32xf32> to vector<8x32xbf16>
    %c0_6 = arith.constant 0 : index
    %c0_7 = arith.constant 0 : index
    %10 = vector.load %arg4[%c0_6, %c0_7] : memref<32x128xbf16, #tpu.memory_space<vmem>>, vector<32x128xbf16>
    %cst_8 = arith.constant dense<0.000000e+00> : vector<8x128xf32>
    %11 = tpu.matmul %9, %10, %cst_8 {dimension_numbers = #tpu.dot_dimension_numbers<[1], [0], [0], [1], [0, 0, 1, 1], [], []>} : vector<8x32xbf16>, vector<32x128xbf16>, vector<8x128xf32> -> vector<8x128xf32>
    %c0_9 = arith.constant 0 : index
    %c0_10 = arith.constant 0 : index
    %12 = vector.load %arg5[%c0_9, %c0_10] : memref<1x128xf32, #tpu.memory_space<vmem>>, vector<1x128xf32>
    %13 = vector.broadcast %12 : vector<1x128xf32> to vector<8x128xf32>
    %14 = arith.addf %11, %13 : vector<8x128xf32>
    %cst_11 = arith.constant dense<0xFF800000> : vector<8xf32>
    %15 = vector.multi_reduction <maximumf>, %14, %cst_11 [1] : vector<8x128xf32> to vector<8xf32>
    %16 = vector.shape_cast %15 : vector<8xf32> to vector<8x1xf32>
    %17 = vector.broadcast %16 : vector<8x1xf32> to vector<8x128xf32>
    %18 = arith.subf %14, %17 : vector<8x128xf32>
    %19 = math.exp %18 : vector<8x128xf32>
    %cst_12 = arith.constant dense<0.000000e+00> : vector<8xf32>
    %20 = vector.multi_reduction <add>, %19, %cst_12 [1] : vector<8x128xf32> to vector<8xf32>
    %21 = vector.shape_cast %20 : vector<8xf32> to vector<8x1xf32>
    %22 = math.log %21 : vector<8x1xf32>
    %23 = vector.broadcast %22 : vector<8x1xf32> to vector<8x128xf32>
    %24 = arith.subf %18, %23 : vector<8x128xf32>
    %25 = vector.extract_strided_slice %24 {offsets = [0, 0], sizes = [8, 16], strides = [1, 1]} : vector<8x128xf32> to vector<8x16xf32>
    %c0_13 = arith.constant 0 : index
    %c0_14 = arith.constant 0 : index
    %26 = vector.load %arg6[%c0_13, %c0_14] : memref<8x16xf32, #tpu.memory_space<vmem>>, vector<8x16xf32>
    tpu.vector_store %arg6[%c0_13, %c0_14], %25 {strides = array<i32>} : memref<8x16xf32, #tpu.memory_space<vmem>>, vector<8x16xf32>,
    return
  }
  func.func @transform_0(%arg0: i32) -> (i32, i32) {
    %c0_i32 = arith.constant 0 : i32
    %c0_i32_0 = arith.constant 0 : i32
    return %arg0, %c0_i32 : i32, i32
  }
  func.func @transform_1(%arg0: i32) -> (i32, i32) {
    %c0_i32 = arith.constant 0 : i32
    %c0_i32_0 = arith.constant 0 : i32
    %c0_i32_1 = arith.constant 0 : i32
    return %c0_i32, %c0_i32_0 : i32, i32
  }
  func.func @transform_2(%arg0: i32) -> (i32, i32) {
    %c0_i32 = arith.constant 0 : i32
    %c0_i32_0 = arith.constant 0 : i32
    %c0_i32_1 = arith.constant 0 : i32
    return %c0_i32, %c0_i32_0 : i32, i32
  }
  func.func @transform_3(%arg0: i32) -> (i32, i32) {
    %c0_i32 = arith.constant 0 : i32
    %c0_i32_0 = arith.constant 0 : i32
    %c0_i32_1 = arith.constant 0 : i32
    return %c0_i32, %c0_i32_0 : i32, i32
  }
  func.func @transform_4(%arg0: i32) -> (i32, i32) {
    %c0_i32 = arith.constant 0 : i32
    %c0_i32_0 = arith.constant 0 : i32
    %c0_i32_1 = arith.constant 0 : i32
    return %c0_i32, %c0_i32_0 : i32, i32
  }
  func.func @transform_5(%arg0: i32) -> (i32, i32) {
    %c0_i32 = arith.constant 0 : i32
    %c0_i32_0 = arith.constant 0 : i32
    return %arg0, %c0_i32 : i32, i32
  }
}

</mosaic_0001>

<llo_original>
// kernel: classification_net.1
$region0: #{classification_net.1}
  #allocation0 [shape = 'u32[]', space=smem, size = 0x4, offset = 0x4, fixed_abs, tag = 'smem constant byte address 0x4 - core index']
  #allocation1 [shape = 'u32[72,128]{1,0:T(1,128)}', space=vmem, size = 0x9000, scoped, tag = 'internal scratch']
  %s0 = inlined_call_operand.hbm [shape: f32[8,32], index: 0, kind: input, shape index: {}]
  %s1 = inlined_call_operand.hbm [shape: bf16[32,32], index: 1, kind: input, shape index: {}]
  %s2 = inlined_call_operand.vmem [shape: f32[1,32], index: 2, kind: input, shape index: {}]
  %s3 = inlined_call_operand.hbm [shape: bf16[32,128], index: 3, kind: input, shape index: {}]
  %s4 = inlined_call_operand.vmem [shape: f32[1,128], index: 4, kind: input, shape index: {}]
  %s5 = inlined_call_operand.hbm [shape: f32[8,16], index: 5, kind: output, shape index: {}]
  %s6 = sld [smem:[#allocation0]]
  $region42: #{classification_net.1} parent=0
    _
  %s8 = ssub.s32 1, %s6
  %s9 = scalar_select 0, %s8, %s6
  $region1: #{classification_net.1} parent=0
    #allocation2 [shape = 'u8[4096]{0}', space=vmem, size = 0x1000, scoped, tag = 'input window, operand 0, single buffered']
    #allocation3 [shape = 's32[1]{0}', space=sflag, size = 0x4, scoped, tag = 'scoped memory for classification_net.1']
    #allocation4 [shape = 's32[1]{0}', space=sflag, size = 0x4, scoped, tag = 'scoped memory for classification_net.1']
    #allocation5 [shape = 'u8[8192]{0}', space=vmem, size = 0x2000, scoped, tag = 'input window, operand 1, single buffered']
    #allocation6 [shape = 's32[1]{0}', space=sflag, size = 0x4, scoped, tag = 'scoped memory for classification_net.1']
    #allocation7 [shape = 'u8[8192]{0}', space=vmem, size = 0x2000, scoped, tag = 'input window, operand 3, single buffered']
    #allocation8 [shape = 'u8[4096]{0}', space=vmem, size = 0x1000, scoped, tag = 'output window, operand 0, single buffered']
    %10 = vsyncpa [#allocation3], 0
    %11 = vsyncpa [#allocation6], 0
    %12 = vsyncpa [#allocation4], 0
    // Predicated region
    $region2: #{classification_net.1} parent=1 // pred_check
      _
    $region3: #{classification_net.1} parent=1 // pred_check_branch
      %14 = sbr.rel (0) target = $region5
    $region4: #{classification_net.1} parent=1 // pred_region
      %16 = vsyncadd [#allocation3], 0
      %s18 = sshll.u32 %s0, 4
      %s19 = int_to_ptr.hbm [resolvable:$true] %s18
      %s20 = sshll.u32 [#allocation2], 4
      %s21 = int_to_ptr.vmem [resolvable:$true] %s20
      %23 = dma.hbm_to_vmem [thread:$0]  %s19, 128, %s21, [#allocation3]
    $region5: #{classification_net.1} parent=1 // pred_fallthru
      _
    // Predicated region
    $region6: #{classification_net.1} parent=1 // pred_check
      _
    $region7: #{classification_net.1} parent=1 // pred_check_branch
      %25 = sbr.rel (0) target = $region9
    $region8: #{classification_net.1} parent=1 // pred_region
      %27 = vsyncadd [#allocation6], 0
      %s28 = sshll.u32 %s1, 4
      %s29 = int_to_ptr.hbm [resolvable:$true] %s28
      %s30 = sshll.u32 [#allocation5], 4
      %s31 = int_to_ptr.vmem [resolvable:$true] %s30
      %36 = dma.hbm_to_vmem [thread:$0]  %s29, 256, %s31, [#allocation6], 64, 64, 4
    $region9: #{classification_net.1} parent=1 // pred_fallthru
      _
    // Predicated region
    $region10: #{classification_net.1} parent=1 // pred_check
      _
    $region11: #{classification_net.1} parent=1 // pred_check_branch
      %38 = sbr.rel (0) target = $region13
    $region12: #{classification_net.1} parent=1 // pred_region
      _
    $region13: #{classification_net.1} parent=1 // pred_fallthru
      _
    // Predicated region
    $region14: #{classification_net.1} parent=1 // pred_check
      _
    $region15: #{classification_net.1} parent=1 // pred_check_branch
      %40 = sbr.rel (0) target = $region17
    $region16: #{classification_net.1} parent=1 // pred_region
      %42 = vsyncadd [#allocation6], 0
      %s43 = sshll.u32 %s3, 4
      %s44 = int_to_ptr.hbm [resolvable:$true] %s43
      %s45 = sshll.u32 [#allocation7], 4
      %s46 = int_to_ptr.vmem [resolvable:$true] %s45
      %51 = dma.hbm_to_vmem [thread:$0]  %s44, 256, %s46, [#allocation6], 64, 64, 4
    $region17: #{classification_net.1} parent=1 // pred_fallthru
      _
    // Predicated region
    $region18: #{classification_net.1} parent=1 // pred_check
      _
    $region19: #{classification_net.1} parent=1 // pred_check_branch
      %53 = sbr.rel (0) target = $region21
    $region20: #{classification_net.1} parent=1 // pred_region
      _
    $region21: #{classification_net.1} parent=1 // pred_fallthru
      _
    // Predicated region
    $region22: #{classification_net.1} parent=1 // pred_check
      _
    $region23: #{classification_net.1} parent=1 // pred_check_branch
      %55 = sbr.rel (0) target = $region25
    $region24: #{classification_net.1} parent=1 // pred_region
      %57 = dma.done [#allocation3], 128
    $region25: #{classification_net.1} parent=1 // pred_fallthru
      _
    // Predicated region
    $region26: #{classification_net.1} parent=1 // pred_check
      _
    $region27: #{classification_net.1} parent=1 // pred_check_branch
      %59 = sbr.rel (0) target = $region29
    $region28: #{classification_net.1} parent=1 // pred_region
      %61 = dma.done [#allocation6], 256
    $region29: #{classification_net.1} parent=1 // pred_fallthru
      _
    // Predicated region
    $region30: #{classification_net.1} parent=1 // pred_check
      _
    $region31: #{classification_net.1} parent=1 // pred_check_branch
      %63 = sbr.rel (0) target = $region33
    $region32: #{classification_net.1} parent=1 // pred_region
      %65 = dma.done [#allocation6], 256
    $region33: #{classification_net.1} parent=1 // pred_fallthru
      _
    %v67 = vld [vmem:[#allocation2] sm:$0xff]
    %v68 = vpack.c.bf16 %v67, %v67
    %v69 = vld [vmem:[#allocation5] sm:$0xf]
    %v70 = vld [vmem:[#allocation5 + $0x4] sm:$0xf]
    %v71 = vld [vmem:[#allocation5 + $0x8] sm:$0xf]
    %v72 = vld [vmem:[#allocation5 + $0xc] sm:$0xf]
    %v73 = vld [vmem:[%s2] sm:$0x1]
    %v75 = vperm.slane %v73, 0
    %v81 = vunpack.c.l.b16 %v69
    %v82 = vunpack.c.l.b16 %v70
    %v83 = vunpack.c.l.b16 %v71
    %v84 = vunpack.c.l.b16 %v72
    %v85 = vpack.c.b16 %v82, %v81
    %v86 = vpack.c.b16 %v84, %v83
    %vm89 = vcmask 261120
    %v91 = vsel %vm89, %v68, 0
    %93 = vmatpush.bf16.msra.mxu0 0
    %94 = vmatpush.bf16.msra.mxu0 0
    %95 = vmatpush.bf16.msra.mxu0 0
    %96 = vmatpush.bf16.msra.mxu0 0
    %97 = vmatpush.bf16.msra.mxu0 0
    %98 = vmatpush.bf16.msra.mxu0 0
    %99 = vmatpush.bf16.msra.mxu0 %v86
    %100 = vmatpush.bf16.msra.mxu0 %v85
    %101 = vmatmul.bf16.gmra.mxu0 %v91
    %v102 = vpop.f32.mrf.mxu0
    %v103 = vadd.f32 %v75, %v102
    %v104 = vpop.f32.mrf.mxu0
    %105 = vdwg.mxu0
    %v106 = vmax.f32 %v103, 0.0
    %v107 = vpack.c.bf16 %v106, %v106
    %v108 = vld [vmem:[#allocation7] sm:$0xf]
    %v109 = vld [vmem:[#allocation7 + $0x4] sm:$0xf]
    %v110 = vld [vmem:[#allocation7 + $0x8] sm:$0xf]
    %v111 = vld [vmem:[#allocation7 + $0xc] sm:$0xf]
    %v112 = vld [vmem:[%s4] sm:$0x1]
    %v114 = vperm.slane %v112, 0
    %v120 = vunpack.c.l.b16 %v108
    %v121 = vunpack.c.l.b16 %v109
    %v122 = vunpack.c.l.b16 %v110
    %v123 = vunpack.c.l.b16 %v111
    %v124 = vpack.c.b16 %v121, %v120
    %v125 = vpack.c.b16 %v123, %v122
    %v129 = vsel %vm89, %v107, 0
    %131 = vmatpush.bf16.msra.mxu0 0
    %132 = vmatpush.bf16.msra.mxu0 0
    %133 = vmatpush.bf16.msra.mxu0 0
    %134 = vmatpush.bf16.msra.mxu0 0
    %135 = vmatpush.bf16.msra.mxu0 0
    %136 = vmatpush.bf16.msra.mxu0 0
    %137 = vmatpush.bf16.msra.mxu0 %v125
    %138 = vmatpush.bf16.msra.mxu0 %v124
    %139 = vmatmul.bf16.gmra.mxu0 %v129
    %v140 = vpop.f32.mrf.mxu0
    %v141 = vadd.f32 %v114, %v140
    %v142 = vpop.f32.mrf.mxu0
    %143 = vdwg.mxu0
    %144 = vmax.xlane.f32.xlu0 %v141
    %v145 = vpop.xlane.xlu0 %144
    %v146 = vsub.f32 %v141, %v145
    %v147 = vmul.f32 %v146, 1.442695
    %v148 = vpow.pop %v147
    %149 = vadd.xlane.f32.xlu0 %v148
    %v150 = vpop.xlane.xlu0 %149
    %v151 = vlog2.pop %v150
    %v152 = vmul.f32 %v151, 0.6931472
    %v153 = vsub.f32 %v146, %v152
    %vm154 = vcmask 130048
    %155 = vst.msk [vmem:[#allocation8] sm:$0xff] %vm154, %v153
    // Predicated region
    $region34: #{classification_net.1} parent=1 // pred_check
      _
    $region35: #{classification_net.1} parent=1 // pred_check_branch
      %157 = sbr.rel (0) target = $region37
    $region36: #{classification_net.1} parent=1 // pred_region
      %159 = vsyncadd [#allocation4], 0
      %s161 = sshll.u32 [#allocation8], 4
      %s162 = int_to_ptr.vmem [resolvable:$true] %s161
      %s163 = sshll.u32 %s5, 4
      %s164 = int_to_ptr.hbm [resolvable:$true] %s163
      %166 = dma.vmem_to_hbm [thread:$0]  %s162, 128, %s164, [#allocation4]
    $region37: #{classification_net.1} parent=1 // pred_fallthru
      _
    // Predicated region
    $region38: #{classification_net.1} parent=1 // pred_check
      _
    $region39: #{classification_net.1} parent=1 // pred_check_branch
      %168 = sbr.rel (0) target = $region41
    $region40: #{classification_net.1} parent=1 // pred_region
      %170 = dma.done [#allocation4], 128
    $region41: #{classification_net.1} parent=1 // pred_fallthru
      _
    %171 = vsyncpa [#allocation3], 1
    %172 = vsyncpa [#allocation6], 1
    %173 = vsyncpa [#allocation4], 1

</llo_original>
